<compile_context>
chip_gen: v7x
topology: tpu7x:2x2x1
jax: 0.10.0
libtpu: 0.0.40
codegen_flags: <defaults>
</compile_context>

<pallas_src>
import jax
import jax.numpy as jnp
from jax.experimental import pallas as pl
from jax.experimental.pallas import tpu as pltpu

_LANE = 128
# (2048, 128) f32 = 1 MiB per frame slice -> 2 MiB input block + 1 MiB output
# block, ~6 MiB double-buffered.  2048 is a multiple of 8 (f32) and 16 (bf16).
_MAX_ROWS_PER_BLOCK = 2048


def _interp_kernel(w0_ref, w1_ref, zero_ref, frames_ref, out_ref):
    # frames_ref block: (1, 2, R, 128); out_ref block: (1, 1, R, 128)
    b = pl.program_id(0)
    nonzero = zero_ref[b] == 0

    @pl.when(nonzero)
    def _():
        f0 = frames_ref[0, 0, :, :].astype(jnp.float32)
        f1 = frames_ref[0, 1, :, :].astype(jnp.float32)
        out_ref[0, 0, :, :] = w0_ref[b] * f0 + w1_ref[b] * f1

    @pl.when(jnp.logical_not(nonzero))
    def _():
        # direction == 0 -> exact zeros (matches the torch zeros init even if
        # frames contain NaN/Inf; avoids the 0*NaN hazard of folded weights).
        out_ref[0, 0, :, :] = jnp.zeros(out_ref.shape[2:], out_ref.dtype)


@jax.jit
def pcle_interpolation(exist_frames, ratio, direction):
    """
    exist_frames: (N, 2, H, W)
    ratio:        (N, 1)
    direction:    (N, 1)  (-1 or 1; 0 -> zeros, as in the torch module)
    returns:      (N, 1, H, W) float32
    """
    n, two, h, w = exist_frames.shape
    assert two == 2
    hw = h * w

    r = ratio.reshape(n).astype(jnp.float32)
    d = direction.reshape(n).astype(jnp.float32)
    pos = d > 0.0
    neg = d < 0.0
    # direction > 0: out = (1-r)*f0 + r*f1 ; direction < 0: out = r*f0 + (1-r)*f1
    w0 = jnp.where(pos, 1.0 - r, jnp.where(neg, r, 0.0))
    w1 = jnp.where(pos, r, jnp.where(neg, 1.0 - r, 0.0))
    zero_flag = jnp.logical_not(pos | neg).astype(jnp.int32)

    rows = pl.cdiv(hw, _LANE)
    hw_pad = rows * _LANE

    # Reshape the spatial axis to (rows, 128).  Padding is only taken when
    # H*W is not a multiple of 128 (<= 127 extra elements per frame).
    if hw_pad == hw:
        frames_2d = exist_frames.reshape(n, 2, rows, _LANE)
    else:
        frames_flat = exist_frames.reshape(n, 2, hw)
        frames_flat = jnp.pad(frames_flat, ((0, 0), (0, 0), (0, hw_pad - hw)))
        frames_2d = frames_flat.reshape(n, 2, rows, _LANE)

    if rows <= _MAX_ROWS_PER_BLOCK:
        r_block = rows                     # full extent -> always a legal block dim
        num_row_tiles = 1
    else:
        r_block = _MAX_ROWS_PER_BLOCK      # multiple of 8 / 16
        num_row_tiles = pl.cdiv(rows, r_block)   # boundary block handled by Pallas

    grid_spec = pltpu.PrefetchScalarGridSpec(
        num_scalar_prefetch=3,
        grid=(n, num_row_tiles),
        in_specs=[
            pl.BlockSpec((1, 2, r_block, _LANE),
                         lambda b, j, *prefetch: (b, 0, j, 0)),
        ],
        out_specs=pl.BlockSpec((1, 1, r_block, _LANE),
                               lambda b, j, *prefetch: (b, 0, j, 0)),
    )

    out_2d = pl.pallas_call(
        _interp_kernel,
        out_shape=jax.ShapeDtypeStruct((n, 1, rows, _LANE), jnp.float32),
        grid_spec=grid_spec,
        compiler_params=pltpu.CompilerParams(
            # Both grid axes are fully independent (no accumulation).
            dimension_semantics=("parallel", "parallel"),
            vmem_limit_bytes=32 * 1024 * 1024,
        ),
    )(w0, w1, zero_flag, frames_2d)

    if hw_pad == hw:
        return out_2d.reshape(n, 1, h, w)
    return out_2d.reshape(n, 1, hw_pad)[:, :, :hw].reshape(n, 1, h, w)


def _reference(exist_frames, ratio, direction):
    # Pure-JAX reference mirroring the PyTorch forward.
    r = ratio.reshape(-1, 1, 1).astype(jnp.float32)
    d = direction.reshape(-1, 1, 1).astype(jnp.float32)
    f = exist_frames.astype(jnp.float32)
    pos = r * f[:, 1] + (1.0 - r) * f[:, 0]
    neg = r * f[:, 0] + (1.0 - r) * f[:, 1]
    out = jnp.where(d > 0, pos, jnp.where(d < 0, neg, jnp.zeros_like(pos)))
    return out[:, None, :, :]


if __name__ == "__main__":
    key = jax.random.PRNGKey(0)
    k1, k2, k3 = jax.random.split(key, 3)

    N, H, W = 2, 16, 16
    exist_frames = jax.random.normal(k1, (N, 2, H, W), dtype=jnp.float32)
    ratio = jax.random.uniform(k2, (N, 1), dtype=jnp.float32)
    # direction in {-1, +1}
    direction = jnp.where(
        jax.random.uniform(k3, (N, 1)) > 0.5, 1.0, -1.0
    ).astype(jnp.float32)

    out = pcle_interpolation(exist_frames, ratio, direction)
    out = jax.block_until_ready(out)

    ref = _reference(exist_frames, ratio, direction)
    assert out.shape == (N, 1, H, W)
    assert jnp.allclose(out, ref, atol=1e-5, rtol=1e-5)

    print("KERNEL_OK")
</pallas_src>

<mosaic_0001>
module attributes {stable_mosaic.version = 11 : i64} {
  func.func @_interp_kernel(%arg0: i32, %arg1: i32, %arg2: memref<2xf32, #tpu.memory_space<smem>>, %arg3: memref<2xf32, #tpu.memory_space<smem>>, %arg4: memref<2xi32, #tpu.memory_space<smem>>, %arg5: memref<1x2x2x128xf32, #tpu.memory_space<vmem>>, %arg6: memref<1x1x2x128xf32, #tpu.memory_space<vmem>>) attributes {dimension_semantics = [#tpu.dimension_semantics<parallel>, #tpu.dimension_semantics<parallel>], iteration_bounds = array<i64: 2, 1>, scalar_prefetch = 3 : i64, scratch_operands = 0 : i64, tpu.core_type = #tpu.core_type<tc>, window_params = [{transform_indices = @transform_0, window_bounds = array<i64: 1, 2, 2, 128>}, {transform_indices = @transform_1, window_bounds = array<i64: 1, 1, 2, 128>}]} {
    %0 = arith.index_cast %arg0 : i32 to index
    %1 = memref.load %arg4[%0] : memref<2xi32, #tpu.memory_space<smem>>
    %c0_i32 = arith.constant 0 : i32
    %2 = arith.cmpi eq, %1, %c0_i32 : i32
    %3 = arith.extui %2 : i1 to i32
    %c0_i32_0 = arith.constant 0 : i32
    %4 = arith.cmpi ne, %3, %c0_i32_0 : i32
    scf.if %4 {
      %c0 = arith.constant 0 : index
      %c0_2 = arith.constant 0 : index
      %c0_3 = arith.constant 0 : index
      %c0_4 = arith.constant 0 : index
      %8 = vector.load %arg5[%c0, %c0_2, %c0_3, %c0_4] : memref<1x2x2x128xf32, #tpu.memory_space<vmem>>, vector<1x1x2x128xf32>
      %9 = vector.shape_cast %8 : vector<1x1x2x128xf32> to vector<2x128xf32>
      %c0_5 = arith.constant 0 : index
      %c1 = arith.constant 1 : index
      %c0_6 = arith.constant 0 : index
      %c0_7 = arith.constant 0 : index
      %10 = vector.load %arg5[%c0_5, %c1, %c0_6, %c0_7] : memref<1x2x2x128xf32, #tpu.memory_space<vmem>>, vector<1x1x2x128xf32>
      %11 = vector.shape_cast %10 : vector<1x1x2x128xf32> to vector<2x128xf32>
      %12 = arith.index_cast %arg0 : i32 to index
      %13 = memref.load %arg2[%12] : memref<2xf32, #tpu.memory_space<smem>>
      %14 = vector.broadcast %13 : f32 to vector<2x128xf32>
      %15 = arith.mulf %14, %9 : vector<2x128xf32>
      %16 = arith.index_cast %arg0 : i32 to index
      %17 = memref.load %arg3[%16] : memref<2xf32, #tpu.memory_space<smem>>
      %18 = vector.broadcast %17 : f32 to vector<2x128xf32>
      %19 = arith.mulf %18, %11 : vector<2x128xf32>
      %20 = arith.addf %15, %19 : vector<2x128xf32>
      %c0_8 = arith.constant 0 : index
      %c0_9 = arith.constant 0 : index
      %c0_10 = arith.constant 0 : index
      %c0_11 = arith.constant 0 : index
      %21 = vector.load %arg6[%c0_8, %c0_9, %c0_10, %c0_11] : memref<1x1x2x128xf32, #tpu.memory_space<vmem>>, vector<1x1x2x128xf32>
      %22 = vector.shape_cast %21 : vector<1x1x2x128xf32> to vector<2x128xf32>
      %23 = vector.shape_cast %20 : vector<2x128xf32> to vector<1x1x2x128xf32>
      tpu.vector_store %arg6[%c0_8, %c0_9, %c0_10, %c0_11], %23 {strides = array<i32>} : memref<1x1x2x128xf32, #tpu.memory_space<vmem>>, vector<1x1x2x128xf32>,
    } else {
    }
    %true = arith.constant true
    %5 = arith.xori %2, %true : i1
    %6 = arith.extui %5 : i1 to i32
    %c0_i32_1 = arith.constant 0 : i32
    %7 = arith.cmpi ne, %6, %c0_i32_1 : i32
    scf.if %7 {
      %cst = arith.constant 0.000000e+00 : f32
      %8 = vector.broadcast %cst : f32 to vector<2x128xf32>
      %c0 = arith.constant 0 : index
      %c0_2 = arith.constant 0 : index
      %c0_3 = arith.constant 0 : index
      %c0_4 = arith.constant 0 : index
      %9 = vector.load %arg6[%c0, %c0_2, %c0_3, %c0_4] : memref<1x1x2x128xf32, #tpu.memory_space<vmem>>, vector<1x1x2x128xf32>
      %10 = vector.shape_cast %9 : vector<1x1x2x128xf32> to vector<2x128xf32>
      %11 = vector.shape_cast %8 : vector<2x128xf32> to vector<1x1x2x128xf32>
      tpu.vector_store %arg6[%c0, %c0_2, %c0_3, %c0_4], %11 {strides = array<i32>} : memref<1x1x2x128xf32, #tpu.memory_space<vmem>>, vector<1x1x2x128xf32>,
    } else {
    }
    return
  }
  func.func @transform_0(%arg0: i32, %arg1: i32, %arg2: memref<2xf32, #tpu.memory_space<smem>>, %arg3: memref<2xf32, #tpu.memory_space<smem>>, %arg4: memref<2xi32, #tpu.memory_space<smem>>) -> (i32, i32, i32, i32) {
    %c0_i32 = arith.constant 0 : i32
    %c0_i32_0 = arith.constant 0 : i32
    %c0_i32_1 = arith.constant 0 : i32
    return %arg0, %c0_i32, %arg1, %c0_i32_0 : i32, i32, i32, i32
  }
  func.func @transform_1(%arg0: i32, %arg1: i32, %arg2: memref<2xf32, #tpu.memory_space<smem>>, %arg3: memref<2xf32, #tpu.memory_space<smem>>, %arg4: memref<2xi32, #tpu.memory_space<smem>>) -> (i32, i32, i32, i32) {
    %c0_i32 = arith.constant 0 : i32
    %c0_i32_0 = arith.constant 0 : i32
    %c0_i32_1 = arith.constant 0 : i32
    return %arg0, %c0_i32, %arg1, %c0_i32_0 : i32, i32, i32, i32
  }
}

</mosaic_0001>

<llo_original>
// kernel: pcle_interpolation.1
$region0: #{pcle_interpolation.1}
  #allocation0 [shape = 'u32[]', space=smem, size = 0x4, offset = 0x4, fixed_abs, tag = 'smem constant byte address 0x4 - core index']
  #allocation1 [shape = 'u32[144,128]{1,0:T(1,128)}', space=vmem, size = 0x12000, scoped, tag = 'internal scratch']
  #allocation2 [shape = 's32[1]{0}', space=sflag, size = 0x4, scoped, tag = 'scoped memory for pcle_interpolation.1']
  #allocation3 [shape = 'u8[512]{0}', space=smem, size = 0x200, scoped, tag = 'prefetched SMEM operand 0']
  #allocation4 [shape = 'u8[512]{0}', space=smem, size = 0x200, scoped, tag = 'prefetched SMEM operand 1']
  #allocation5 [shape = 'u8[512]{0}', space=smem, size = 0x200, scoped, tag = 'prefetched SMEM operand 2']
  %s0 = inlined_call_operand.vmem [shape: f32[2], index: 0, kind: input, shape index: {}]
  %s1 = inlined_call_operand.vmem [shape: f32[2], index: 1, kind: input, shape index: {}]
  %s2 = inlined_call_operand.vmem [shape: s32[2], index: 2, kind: input, shape index: {}]
  %s3 = inlined_call_operand.vmem [shape: f32[2,2,2,128], index: 3, kind: input, shape index: {}]
  %s4 = inlined_call_operand.vmem [shape: f32[2,1,2,128], index: 4, kind: output, shape index: {}]
  %s5 = sld [smem:[#allocation0]]
  $region45: #{pcle_interpolation.1} parent=0
    _
  %s7 = ssub.s32 1, %s5
  %s8 = scalar_select 0, %s7, %s5
  %s9 = sshll.u32 %s0, 4
  %s10 = int_to_ptr.vmem [resolvable:$true] %s9
  %12 = dma.vmem_to_smem %s10, 16, [#allocation3], [#allocation2]
  %s13 = sshll.u32 %s1, 4
  %s14 = int_to_ptr.vmem [resolvable:$true] %s13
  %16 = dma.vmem_to_smem %s14, 16, [#allocation4], [#allocation2]
  %s17 = sshll.u32 %s2, 4
  %s18 = int_to_ptr.vmem [resolvable:$true] %s17
  %20 = dma.vmem_to_smem %s18, 16, [#allocation5], [#allocation2]
  %21 = dma.done [#allocation2], 48
  %22 = sfence
  loop: start=0, step=1, limit=4
  $region2: #{pcle_interpolation.1} parent=0 // loop_pre_header
    _
  $region3: #{pcle_interpolation.1} parent=0 // loop_header
    %s24 = sphi 0, %s28
    %p25 = scmp.ge.s32.totalorder %s24, 4
    %s31 = sphi 0, %s43
    %s32 = sphi 0, %s39
    %s33 = sphi 0, %s31
    %s34 = sphi 0, %s32
    %s35 = sphi 0, %s33
    %s36 = sphi 0, %s34
    %s48 = sphi 0, %s50
    %s51 = sphi 0, %s48
    %s52 = sphi 0, %s51
    %s68 = sphi 0, %s52
    %s76 = sphi 0, %s78
    %s79 = sphi 0, %s76
    %s80 = sphi 0, %s79
    %s96 = sphi 0, %s80
  $region4: #{pcle_interpolation.1} parent=0 // loop_header_branch
    %27 = sbr.rel (%p25) target = $region8
  $region5: #{pcle_interpolation.1} parent=0 // loop_body
    %s29 = ssub.s32 %s24, 1
    %s30 = ssub.s32 %s24, 2
    %s37 = sadd.s32 1, %s32
    %p38 = scmp.ge.s32.totalorder %s37, 1
    %s39 = scalar_select %p38, 0, %s37
    %s40 = sadd.s32 1, %s31
    %s41 = scalar_select %p38, %s40, %s31
    %p42 = scmp.ge.s32.totalorder %s41, 2
    %s43 = scalar_select %p42, 0, %s41
    %s44 = ssub.s32 %s31, %s43
    %s45 = ssub.s32 %s32, %s39
    %s46 = sor.u32 %s44, %s45
    %p47 = scmp.eq.s32.totalorder %s46, 0
    %s49 = sadd.s32 %s48, 1
    %s50 = scalar_select %p47, %s48, %s49
    %p53 = pneg %p47
    %p54 = scmp.eq.s32.totalorder %s24, 1
    %p55 = por %p53, %p54
    %p56 = scmp.ne.s32.totalorder %s48, %s51
    %p57 = scmp.eq.s32.totalorder %s24, 0
    %p58 = por %p56, %p57
    %p59 = scmp.ne.s32.totalorder %s48, %s51
    %p60 = scmp.eq.s32.totalorder %s29, 1
    %p61 = por %p59, %p60
    %p62 = scmp.ne.s32.totalorder %s51, %s52
    %p63 = scmp.eq.s32.totalorder %s29, 0
    %p64 = por %p62, %p63
    %p65 = scmp.ne.s32.totalorder %s51, %s52
    %p66 = scmp.eq.s32.totalorder %s30, 1
    %p67 = por %p65, %p66
    %p69 = scmp.ne.s32.totalorder %s52, %s68
    %p70 = scmp.eq.s32.totalorder %s30, 0
    %p71 = por %p69, %p70
    %s72 = ssub.s32 %s31, %s43
    %s73 = ssub.s32 %s32, %s39
    %s74 = sor.u32 %s72, %s73
    %p75 = scmp.eq.s32.totalorder %s74, 0
    %s77 = sadd.s32 %s76, 1
    %s78 = scalar_select %p75, %s76, %s77
    %p81 = pneg %p75
    %p82 = scmp.eq.s32.totalorder %s24, 1
    %p83 = por %p81, %p82
    %p84 = scmp.ne.s32.totalorder %s76, %s79
    %p85 = scmp.eq.s32.totalorder %s24, 0
    %p86 = por %p84, %p85
    %p87 = scmp.ne.s32.totalorder %s76, %s79
    %p88 = scmp.eq.s32.totalorder %s29, 1
    %p89 = por %p87, %p88
    %p90 = scmp.ne.s32.totalorder %s79, %s80
    %p91 = scmp.eq.s32.totalorder %s29, 0
    %p92 = por %p90, %p91
    %p93 = scmp.ne.s32.totalorder %s79, %s80
    %p94 = scmp.eq.s32.totalorder %s30, 1
    %p95 = por %p93, %p94
    %p97 = scmp.ne.s32.totalorder %s80, %s96
    %p98 = scmp.eq.s32.totalorder %s30, 0
    %p99 = por %p97, %p98
    %p100 = scmp.le.s32.totalorder 1, %s24
    %p101 = scmp.lt.s32.totalorder %s24, 3
    %p102 = pnand %p100, %p101
    %p103 = pneg %p102
    // Predicated region
    $region9: #{pcle_interpolation.1} parent=5 // pred_check
      _
    $region10: #{pcle_interpolation.1} parent=5 // pred_check_branch
      %105 = sbr.rel (%p102) target = $region12
    $region11: #{pcle_interpolation.1} parent=5 // pred_region
      %s106 = ssub.s32 %s24, 1
    $region12: #{pcle_interpolation.1} parent=5 // pred_fallthru
      _
    %p107 = scmp.lt.s32.totalorder %s24, 2
    // Predicated region
    $region13: #{pcle_interpolation.1} parent=5 // pred_check
      %p108 = pneg %p107
    $region14: #{pcle_interpolation.1} parent=5 // pred_check_branch
      %110 = sbr.rel (%p108) target = $region16
    $region15: #{pcle_interpolation.1} parent=5 // pred_region
      // Predicated region
      $region17: #{pcle_interpolation.1} parent=15 // pred_check
        %p111 = pneg %p58
      $region18: #{pcle_interpolation.1} parent=15 // pred_check_branch
        %113 = sbr.rel (%p111) target = $region20
      $region19: #{pcle_interpolation.1} parent=15 // pred_region
        %p114 = scmp.lt.s32.totalorder %s31, 1
        %s115 = scalar_select %p114, %s31, 1
        %p116 = scmp.lt.s32.totalorder %s32, 0
        %s117 = scalar_select %p116, %s32, 0
        %s118 = smul.addr %s115, 2
        %s119 = sadd.s32 %s117, %s118
        %s120 = smul.addr %s119, 2
        %s121 = scalar_lea.vmem %s3, %s120
      $region20: #{pcle_interpolation.1} parent=15 // pred_fallthru
        _
    $region16: #{pcle_interpolation.1} parent=5 // pred_fallthru
      _
    %p122 = scmp.le.s32.totalorder 1, %s24
    %p123 = scmp.lt.s32.totalorder %s24, 3
    %p124 = pnand %p122, %p123
    %p125 = pneg %p124
    // Predicated region
    $region21: #{pcle_interpolation.1} parent=5 // pred_check
      _
    $region22: #{pcle_interpolation.1} parent=5 // pred_check_branch
      %127 = sbr.rel (%p124) target = $region24
    $region23: #{pcle_interpolation.1} parent=5 // pred_region
      %s128 = ssub.s32 %s24, 1
      %p129 = scmp.lt.s32.totalorder %s33, 1
      %s130 = scalar_select %p129, %s33, 1
      %p131 = scmp.lt.s32.totalorder %s34, 0
      %s132 = scalar_select %p131, %s34, 0
      %s133 = smul.addr %s130, 2
      %s134 = sadd.s32 %s132, %s133
      %s135 = smul.addr %s134, 2
      %s136 = scalar_lea.vmem %s3, %s135
      %p137 = pneg %p64
      %p138 = pneg %p61
      %p139 = pneg %p92
      %p140 = pneg %p89
      %p141 = scmp.lt.s32.totalorder %s33, 1
      %s142 = scalar_select %p141, %s33, 1
      %p143 = scmp.lt.s32.totalorder %s34, 0
      %s144 = scalar_select %p143, %s34, 0
      %s145 = sadd.s32 %s144, %s142
      %s146 = smul.addr %s145, 2
      %s147 = scalar_lea.vmem %s4, %s146
      %p148 = scmp.lt.s32.totalorder %s33, 1
      %s149 = scalar_select %p148, %s33, 1
      %p150 = scmp.lt.s32.totalorder %s34, 0
      %s151 = scalar_select %p150, %s34, 0
      %s152 = smul.addr %s149, 2
      %s153 = sadd.s32 %s151, %s152
      %s154 = smul.addr %s153, 2
      %s155 = scalar_lea.vmem %s3, %s154
      %p156 = scmp.lt.s32.totalorder %s33, 1
      %s157 = scalar_select %p156, %s33, 1
      %p158 = scmp.lt.s32.totalorder %s34, 0
      %s159 = scalar_select %p158, %s34, 0
      %s160 = sadd.s32 %s159, %s157
      %s161 = smul.addr %s160, 2
      %s162 = scalar_lea.vmem %s4, %s161
      %s163 = sld [smem:[#allocation5 + %s33]]
      %p164 = scmp.eq.s32.totalorder %s163, 0
      // Predicated region
      $region25: #{pcle_interpolation.1} parent=23 // pred_check
        %p165 = pneg %p164
      $region26: #{pcle_interpolation.1} parent=23 // pred_check_branch
        %167 = sbr.rel (%p165) target = $region28
      $region27: #{pcle_interpolation.1} parent=23 // pred_region
        %v168 = vld [vmem:[%s155] sm:$0x3]
        %s169 = scalar_lea.vmem %s155, 2
        %v170 = vld [vmem:[%s169] sm:$0x3]
        %s171 = sld [smem:[#allocation3 + %s33]]
        %v172 = vstv %s171
        %v173 = vmul.f32 %v172, %v168
        %s174 = sld [smem:[#allocation4 + %s33]]
        %v175 = vstv %s174
        %v176 = vmul.f32 %v175, %v170
        %v177 = vadd.f32 %v173, %v176
        %178 = vst [vmem:[%s162] sm:$0x3] %v177
      $region28: #{pcle_interpolation.1} parent=23 // pred_fallthru
        _
      %p179 = scmp.ne.s32.totalorder %s163, 0
      // Predicated region
      $region29: #{pcle_interpolation.1} parent=23 // pred_check
        %p180 = pneg %p179
      $region30: #{pcle_interpolation.1} parent=23 // pred_check_branch
        %182 = sbr.rel (%p180) target = $region32
      $region31: #{pcle_interpolation.1} parent=23 // pred_region
        %183 = vst [vmem:[%s162] sm:$0x3] 0.0
      $region32: #{pcle_interpolation.1} parent=23 // pred_fallthru
        _
      %p184 = scmp.lt.s32.totalorder %s33, 1
      %s185 = scalar_select %p184, %s33, 1
      %p186 = scmp.lt.s32.totalorder %s34, 0
      %s187 = scalar_select %p186, %s34, 0
      %s188 = sadd.s32 %s187, %s185
      %s189 = smul.addr %s188, 2
      %s190 = scalar_lea.vmem %s4, %s189
      // Predicated region
      $region33: #{pcle_interpolation.1} parent=23 // pred_check
        %p191 = pneg %p89
      $region34: #{pcle_interpolation.1} parent=23 // pred_check_branch
        %193 = sbr.rel (%p191) target = $region36
      $region35: #{pcle_interpolation.1} parent=23 // pred_region
        _
      $region36: #{pcle_interpolation.1} parent=23 // pred_fallthru
        _
    $region24: #{pcle_interpolation.1} parent=5 // pred_fallthru
      _
    %p194 = scmp.le.s32.totalorder 2, %s24
    // Predicated region
    $region37: #{pcle_interpolation.1} parent=5 // pred_check
      %p195 = pneg %p194
    $region38: #{pcle_interpolation.1} parent=5 // pred_check_branch
      %197 = sbr.rel (%p195) target = $region40
    $region39: #{pcle_interpolation.1} parent=5 // pred_region
      %s198 = ssub.s32 %s24, 2
      // Predicated region
      $region41: #{pcle_interpolation.1} parent=39 // pred_check
        %p199 = pneg %p95
      $region42: #{pcle_interpolation.1} parent=39 // pred_check_branch
        %201 = sbr.rel (%p199) target = $region44
      $region43: #{pcle_interpolation.1} parent=39 // pred_region
        %p202 = scmp.lt.s32.totalorder %s35, 1
        %s203 = scalar_select %p202, %s35, 1
        %p204 = scmp.lt.s32.totalorder %s36, 0
        %s205 = scalar_select %p204, %s36, 0
        %s206 = sadd.s32 %s205, %s203
        %s207 = smul.addr %s206, 2
        %s208 = scalar_lea.vmem %s4, %s207
      $region44: #{pcle_interpolation.1} parent=39 // pred_fallthru
        _
    $region40: #{pcle_interpolation.1} parent=5 // pred_fallthru
      _
  $region6: #{pcle_interpolation.1} parent=0 // loop_footer
    %s28 = sadd.s32 1, %s24
  $region7: #{pcle_interpolation.1} parent=0 // loop_footer_branch
    %23 = sbr.rel target = $region3
  $region8: #{pcle_interpolation.1} parent=0 // loop_exit
    _

</llo_original>
